<compile_context>
chip_gen: v7x
topology: tpu7x:2x2x1
jax: 0.10.0
libtpu: 0.0.40
codegen_flags: <defaults>
</compile_context>

<pallas_src>
import functools

import jax
import jax.numpy as jnp
from jax.experimental import pallas as pl
from jax.experimental.pallas import tpu as pltpu

LANE = 128          # TPU vreg lane width
SUBLANE_BF16 = 16   # bf16 sublane tile (packed 2-per-sublane)


def _round_up(n, m):
    return ((n + m - 1) // m) * m


def _cdiv(a, b):
    return -(-a // b)


def _pad_to(a, shape):
    """Zero-pad array `a` up to `shape` (trailing pads only)."""
    pads = [(0, t - s) for s, t in zip(a.shape, shape)]
    return jnp.pad(a, pads)


def qnetwork_kernel(x_ref, w1_ref, b1_ref, w2_ref, b2_ref, w3_ref, b3_ref,
                    out_ref):
    """Fused MLP forward on one batch tile.

    x and weights arrive as bf16 (MXU-native inputs); accumulation is f32 on the
    MXU; bias/ReLU/store are f32 on the VPU (v5e-safe epilogue). The final store
    is only `action_dim` lanes wide (no padded output slab).
    """
    x = x_ref[...]                                           # (tb, state_dim) bf16

    # Layer 1: Linear(state_dim, hid_p) + ReLU
    h1 = jnp.dot(x, w1_ref[...], preferred_element_type=jnp.float32)
    h1 = jnp.maximum(h1 + b1_ref[...], 0.0)                  # (tb, hid_p) f32

    # Layer 2: Linear(hid_p, hid_p) + ReLU
    h2 = jnp.dot(h1.astype(jnp.bfloat16), w2_ref[...],
                 preferred_element_type=jnp.float32)
    h2 = jnp.maximum(h2 + b2_ref[...], 0.0)                  # (tb, hid_p) f32

    # Layer 3: Linear(hid_p, action_dim) — narrow store (masked vst is cheap vs
    # writing a 128-wide padded slab).
    q = jnp.dot(h2.astype(jnp.bfloat16), w3_ref[...],
                preferred_element_type=jnp.float32)
    out_ref[...] = (q + b3_ref[...]).astype(out_ref.dtype)


def prepare_qnetwork_params(params):
    """Pad/cast weights once (call at init / after each optimizer step).

    Hidden width is padded to 128 lanes; the output width is NOT padded
    (narrow output store). Weights -> bf16, biases -> f32.
    Zero-padded hidden columns provably contribute 0: ReLU(0 + 0) = 0 feeding
    zero weight rows of the next layer.
    """
    w1, b1, w2, b2, w3, b3 = params
    state_dim, hidden = w1.shape
    action_dim = w3.shape[1]
    hid_p = _round_up(hidden, LANE)

    w1p = _pad_to(w1, (state_dim, hid_p)).astype(jnp.bfloat16)
    b1p = _pad_to(b1.reshape(1, -1), (1, hid_p)).astype(jnp.float32)
    w2p = _pad_to(w2, (hid_p, hid_p)).astype(jnp.bfloat16)
    b2p = _pad_to(b2.reshape(1, -1), (1, hid_p)).astype(jnp.float32)
    w3p = _pad_to(w3, (hid_p, action_dim)).astype(jnp.bfloat16)   # cols stay narrow
    b3p = b3.reshape(1, -1).astype(jnp.float32)
    return (w1p, b1p, w2p, b2p, w3p, b3p)


def _choose_tile(batch, block_batch):
    """Batch tile size: multiple of 16 (bf16 sublane), minimal padding,
    and >= 2 tiles when the batch is big enough (v7x megacore)."""
    n_tiles = _cdiv(batch, block_batch)
    if n_tiles == 1 and batch >= 2 * SUBLANE_BF16:
        n_tiles = 2                       # give v7x's second TensorCore work
    tb = _round_up(_cdiv(batch, n_tiles), SUBLANE_BF16)
    return tb


@functools.partial(jax.jit, static_argnames=("block_batch",))
def qnetwork_forward(x, prepared_params, block_batch=2048):
    """QNetwork forward via a single fused pallas_call, gridded over the batch.

    `prepared_params` must come from prepare_qnetwork_params (bf16 weights,
    f32 biases, hidden padded to 128).
    """
    w1p, b1p, w2p, b2p, w3p, b3p = prepared_params
    batch, state_dim = x.shape
    hid_p = w1p.shape[1]
    action_dim = w3p.shape[1]

    tb = _choose_tile(batch, block_batch)
    batch_p = _round_up(batch, tb)
    xp = _pad_to(x, (batch_p, state_dim)).astype(jnp.bfloat16)

    grid = (batch_p // tb,)

    out = pl.pallas_call(
        qnetwork_kernel,
        out_shape=jax.ShapeDtypeStruct((batch_p, action_dim), jnp.float32),
        grid=grid,
        in_specs=[
            # x tiles stream over the batch axis.
            pl.BlockSpec((tb, state_dim), lambda i: (i, 0)),
            # Weights/biases: constant index_map -> stay resident in VMEM.
            pl.BlockSpec((state_dim, hid_p), lambda i: (0, 0)),
            pl.BlockSpec((1, hid_p), lambda i: (0, 0)),
            pl.BlockSpec((hid_p, hid_p), lambda i: (0, 0)),
            pl.BlockSpec((1, hid_p), lambda i: (0, 0)),
            pl.BlockSpec((hid_p, action_dim), lambda i: (0, 0)),
            pl.BlockSpec((1, action_dim), lambda i: (0, 0)),
        ],
        # Narrow output block: last dim equals the full array dim (legal), so we
        # never write or re-read a 128-lane-padded slab.
        out_specs=pl.BlockSpec((tb, action_dim), lambda i: (i, 0)),
        compiler_params=pltpu.CompilerParams(
            dimension_semantics=("parallel",),   # shards batch tiles across TCs on v7x
            vmem_limit_bytes=32 * 1024 * 1024,
        ),
    )(xp, w1p, b1p, w2p, b2p, w3p, b3p)

    # Only padded rows (if any) need slicing; output width is already action_dim.
    return out if batch_p == batch else out[:batch]


def init_qnetwork_params(key, state_dim, action_dim, hidden_dim=64):
    """Mimics nn.Linear default init: uniform(-1/sqrt(fan_in), 1/sqrt(fan_in)).

    Weights are (in_features, out_features) (transposed vs PyTorch);
    biases are (1, out_features).
    """
    def linear_init(k, fan_in, fan_out):
        kw, kb = jax.random.split(k)
        bound = 1.0 / jnp.sqrt(jnp.float32(fan_in))
        w = jax.random.uniform(kw, (fan_in, fan_out), jnp.float32, -bound, bound)
        b = jax.random.uniform(kb, (1, fan_out), jnp.float32, -bound, bound)
        return w, b

    k1, k2, k3 = jax.random.split(key, 3)
    w1, b1 = linear_init(k1, state_dim, hidden_dim)
    w2, b2 = linear_init(k2, hidden_dim, hidden_dim)
    w3, b3 = linear_init(k3, hidden_dim, action_dim)
    return (w1, b1, w2, b2, w3, b3)


def qnetwork_reference(x, params, mxu_dtype=jnp.float32):
    """Pure-JAX reference. mxu_dtype=bf16 mimics the kernel's MXU-input cast."""
    w1, b1, w2, b2, w3, b3 = params
    dot = lambda a, w: jnp.dot(a.astype(mxu_dtype), w.astype(mxu_dtype),
                               preferred_element_type=jnp.float32)
    h1 = jnp.maximum(dot(x, w1) + b1, 0.0)
    h2 = jnp.maximum(dot(h1, w2) + b2, 0.0)
    return dot(h2, w3) + b3


if __name__ == "__main__":
    # Small DQN-style shapes, e.g. CartPole: state_dim=4, action_dim=2.
    state_dim, action_dim, hidden_dim = 4, 2, 64

    key = jax.random.PRNGKey(0)
    k_params, k_x1, k_x2 = jax.random.split(key, 3)

    params = init_qnetwork_params(k_params, state_dim, action_dim, hidden_dim)
    prepared = prepare_qnetwork_params(params)   # pad/cast ONCE, reused per step

    def check(x):
        q_pallas = qnetwork_forward(x, prepared)
        jax.block_until_ready(q_pallas)
        assert q_pallas.shape == (x.shape[0], action_dim)
        # Tight check vs a reference using the same bf16-input / f32-accum numerics.
        q_ref_bf16 = qnetwork_reference(x, params, mxu_dtype=jnp.bfloat16)
        assert jnp.allclose(q_pallas, q_ref_bf16, atol=1e-4, rtol=1e-4), \
            "mismatch vs bf16-matmul reference"
        # Loose check vs the pure-f32 reference (bf16 input rounding only).
        q_ref_f32 = qnetwork_reference(x, params, mxu_dtype=jnp.float32)
        assert jnp.allclose(q_pallas, q_ref_f32, atol=5e-2, rtol=5e-2), \
            "mismatch vs f32 reference beyond bf16 rounding"

    # Tiny inference-style batch (single tile, padded rows sliced off).
    check(jax.random.normal(k_x1, (8, state_dim), jnp.float32))
    # Awkward training-style batch (multi-tile grid, exercises megacore split).
    check(jax.random.normal(k_x2, (520, state_dim), jnp.float32))

    print("KERNEL_OK")
</pallas_src>

<mosaic_0001>
module attributes {stable_mosaic.version = 11 : i64} {
  func.func @qnetwork_kernel(%arg0: i32, %arg1: memref<16x4xbf16, #tpu.memory_space<vmem>>, %arg2: memref<4x128xbf16, #tpu.memory_space<vmem>>, %arg3: memref<1x128xf32, #tpu.memory_space<vmem>>, %arg4: memref<128x128xbf16, #tpu.memory_space<vmem>>, %arg5: memref<1x128xf32, #tpu.memory_space<vmem>>, %arg6: memref<128x2xbf16, #tpu.memory_space<vmem>>, %arg7: memref<1x2xf32, #tpu.memory_space<vmem>>, %arg8: memref<16x2xf32, #tpu.memory_space<vmem>>) attributes {dimension_semantics = [#tpu.dimension_semantics<parallel>], iteration_bounds = array<i64: 1>, scalar_prefetch = 0 : i64, scratch_operands = 0 : i64, tpu.core_type = #tpu.core_type<tc>, window_params = [{transform_indices = @transform_0, window_bounds = array<i64: 16, 4>}, {pipeline_mode = #tpu.pipeline_mode<synchronous>, transform_indices = @transform_1, window_bounds = array<i64: 4, 128>}, {pipeline_mode = #tpu.pipeline_mode<synchronous>, transform_indices = @transform_2, window_bounds = array<i64: 1, 128>}, {pipeline_mode = #tpu.pipeline_mode<synchronous>, transform_indices = @transform_3, window_bounds = array<i64: 128, 128>}, {pipeline_mode = #tpu.pipeline_mode<synchronous>, transform_indices = @transform_4, window_bounds = array<i64: 1, 128>}, {pipeline_mode = #tpu.pipeline_mode<synchronous>, transform_indices = @transform_5, window_bounds = array<i64: 128, 2>}, {pipeline_mode = #tpu.pipeline_mode<synchronous>, transform_indices = @transform_6, window_bounds = array<i64: 1, 2>}, {transform_indices = @transform_7, window_bounds = array<i64: 16, 2>}]} {
    %c0 = arith.constant 0 : index
    %c0_0 = arith.constant 0 : index
    %0 = vector.load %arg1[%c0, %c0_0] : memref<16x4xbf16, #tpu.memory_space<vmem>>, vector<16x4xbf16>
    %c0_1 = arith.constant 0 : index
    %c0_2 = arith.constant 0 : index
    %1 = vector.load %arg2[%c0_1, %c0_2] : memref<4x128xbf16, #tpu.memory_space<vmem>>, vector<4x128xbf16>
    %cst = arith.constant dense<0.000000e+00> : vector<16x128xf32>
    %2 = tpu.matmul %0, %1, %cst {dimension_numbers = #tpu.dot_dimension_numbers<[1], [0], [0], [1], [0, 0, 1, 1], [], []>} : vector<16x4xbf16>, vector<4x128xbf16>, vector<16x128xf32> -> vector<16x128xf32>
    %c0_3 = arith.constant 0 : index
    %c0_4 = arith.constant 0 : index
    %3 = vector.load %arg3[%c0_3, %c0_4] : memref<1x128xf32, #tpu.memory_space<vmem>>, vector<1x128xf32>
    %4 = vector.broadcast %3 : vector<1x128xf32> to vector<16x128xf32>
    %5 = arith.addf %2, %4 : vector<16x128xf32>
    %cst_5 = arith.constant 0.000000e+00 : f32
    %6 = vector.broadcast %cst_5 : f32 to vector<16x128xf32>
    %7 = arith.maximumf %5, %6 : vector<16x128xf32>
    %8 = arith.truncf %7 : vector<16x128xf32> to vector<16x128xbf16>
    %c0_6 = arith.constant 0 : index
    %c0_7 = arith.constant 0 : index
    %9 = vector.load %arg4[%c0_6, %c0_7] : memref<128x128xbf16, #tpu.memory_space<vmem>>, vector<128x128xbf16>
    %cst_8 = arith.constant dense<0.000000e+00> : vector<16x128xf32>
    %10 = tpu.matmul %8, %9, %cst_8 {dimension_numbers = #tpu.dot_dimension_numbers<[1], [0], [0], [1], [0, 0, 1, 1], [], []>} : vector<16x128xbf16>, vector<128x128xbf16>, vector<16x128xf32> -> vector<16x128xf32>
    %c0_9 = arith.constant 0 : index
    %c0_10 = arith.constant 0 : index
    %11 = vector.load %arg5[%c0_9, %c0_10] : memref<1x128xf32, #tpu.memory_space<vmem>>, vector<1x128xf32>
    %12 = vector.broadcast %11 : vector<1x128xf32> to vector<16x128xf32>
    %13 = arith.addf %10, %12 : vector<16x128xf32>
    %cst_11 = arith.constant 0.000000e+00 : f32
    %14 = vector.broadcast %cst_11 : f32 to vector<16x128xf32>
    %15 = arith.maximumf %13, %14 : vector<16x128xf32>
    %16 = arith.truncf %15 : vector<16x128xf32> to vector<16x128xbf16>
    %c0_12 = arith.constant 0 : index
    %c0_13 = arith.constant 0 : index
    %17 = vector.load %arg6[%c0_12, %c0_13] : memref<128x2xbf16, #tpu.memory_space<vmem>>, vector<128x2xbf16>
    %cst_14 = arith.constant dense<0.000000e+00> : vector<16x2xf32>
    %18 = tpu.matmul %16, %17, %cst_14 {dimension_numbers = #tpu.dot_dimension_numbers<[1], [0], [0], [1], [0, 0, 1, 1], [], []>} : vector<16x128xbf16>, vector<128x2xbf16>, vector<16x2xf32> -> vector<16x2xf32>
    %c0_15 = arith.constant 0 : index
    %c0_16 = arith.constant 0 : index
    %19 = vector.load %arg7[%c0_15, %c0_16] : memref<1x2xf32, #tpu.memory_space<vmem>>, vector<1x2xf32>
    %20 = vector.broadcast %19 : vector<1x2xf32> to vector<16x2xf32>
    %21 = arith.addf %18, %20 : vector<16x2xf32>
    %c0_17 = arith.constant 0 : index
    %c0_18 = arith.constant 0 : index
    %22 = vector.load %arg8[%c0_17, %c0_18] : memref<16x2xf32, #tpu.memory_space<vmem>>, vector<16x2xf32>
    tpu.vector_store %arg8[%c0_17, %c0_18], %21 {strides = array<i32>} : memref<16x2xf32, #tpu.memory_space<vmem>>, vector<16x2xf32>,
    return
  }
  func.func @transform_0(%arg0: i32) -> (i32, i32) {
    %c0_i32 = arith.constant 0 : i32
    %c0_i32_0 = arith.constant 0 : i32
    return %arg0, %c0_i32 : i32, i32
  }
  func.func @transform_1(%arg0: i32) -> (i32, i32) {
    %c0_i32 = arith.constant 0 : i32
    %c0_i32_0 = arith.constant 0 : i32
    %c0_i32_1 = arith.constant 0 : i32
    return %c0_i32, %c0_i32_0 : i32, i32
  }
  func.func @transform_2(%arg0: i32) -> (i32, i32) {
    %c0_i32 = arith.constant 0 : i32
    %c0_i32_0 = arith.constant 0 : i32
    %c0_i32_1 = arith.constant 0 : i32
    return %c0_i32, %c0_i32_0 : i32, i32
  }
  func.func @transform_3(%arg0: i32) -> (i32, i32) {
    %c0_i32 = arith.constant 0 : i32
    %c0_i32_0 = arith.constant 0 : i32
    %c0_i32_1 = arith.constant 0 : i32
    return %c0_i32, %c0_i32_0 : i32, i32
  }
  func.func @transform_4(%arg0: i32) -> (i32, i32) {
    %c0_i32 = arith.constant 0 : i32
    %c0_i32_0 = arith.constant 0 : i32
    %c0_i32_1 = arith.constant 0 : i32
    return %c0_i32, %c0_i32_0 : i32, i32
  }
  func.func @transform_5(%arg0: i32) -> (i32, i32) {
    %c0_i32 = arith.constant 0 : i32
    %c0_i32_0 = arith.constant 0 : i32
    %c0_i32_1 = arith.constant 0 : i32
    return %c0_i32, %c0_i32_0 : i32, i32
  }
  func.func @transform_6(%arg0: i32) -> (i32, i32) {
    %c0_i32 = arith.constant 0 : i32
    %c0_i32_0 = arith.constant 0 : i32
    %c0_i32_1 = arith.constant 0 : i32
    return %c0_i32, %c0_i32_0 : i32, i32
  }
  func.func @transform_7(%arg0: i32) -> (i32, i32) {
    %c0_i32 = arith.constant 0 : i32
    %c0_i32_0 = arith.constant 0 : i32
    return %arg0, %c0_i32 : i32, i32
  }
}

</mosaic_0001>

<llo_original>
// kernel: qnetwork_forward.1
$region0: #{qnetwork_forward.1}
  #allocation0 [shape = 'u32[]', space=smem, size = 0x4, offset = 0x4, fixed_abs, tag = 'smem constant byte address 0x4 - core index']
  #allocation1 [shape = 'u32[144,128]{1,0:T(1,128)}', space=vmem, size = 0x12000, scoped, tag = 'internal scratch']
  %s0 = inlined_call_operand.vmem [shape: bf16[16,4], index: 0, kind: input, shape index: {}]
  %s1 = inlined_call_operand.vmem [shape: bf16[4,128], index: 1, kind: input, shape index: {}]
  %s2 = inlined_call_operand.vmem [shape: f32[1,128], index: 2, kind: input, shape index: {}]
  %s3 = inlined_call_operand.vmem [shape: bf16[128,128], index: 3, kind: input, shape index: {}]
  %s4 = inlined_call_operand.vmem [shape: f32[1,128], index: 4, kind: input, shape index: {}]
  %s5 = inlined_call_operand.vmem [shape: bf16[128,2], index: 5, kind: input, shape index: {}]
  %s6 = inlined_call_operand.vmem [shape: f32[1,2], index: 6, kind: input, shape index: {}]
  %s7 = inlined_call_operand.vmem [shape: f32[16,2], index: 7, kind: output, shape index: {}]
  %s8 = sld [smem:[#allocation0]]
  $region38: #{qnetwork_forward.1} parent=0
    _
  %s10 = ssub.s32 1, %s8
  %s11 = scalar_select 0, %s10, %s8
  // Predicated region
  $region2: #{qnetwork_forward.1} parent=0 // pred_check
    _
  $region3: #{qnetwork_forward.1} parent=0 // pred_check_branch
    %13 = sbr.rel (0) target = $region5
  $region4: #{qnetwork_forward.1} parent=0 // pred_region
    _
  $region5: #{qnetwork_forward.1} parent=0 // pred_fallthru
    _
  // Predicated region
  $region6: #{qnetwork_forward.1} parent=0 // pred_check
    _
  $region7: #{qnetwork_forward.1} parent=0 // pred_check_branch
    %15 = sbr.rel (0) target = $region9
  $region8: #{qnetwork_forward.1} parent=0 // pred_region
    _
  $region9: #{qnetwork_forward.1} parent=0 // pred_fallthru
    _
  // Predicated region
  $region10: #{qnetwork_forward.1} parent=0 // pred_check
    _
  $region11: #{qnetwork_forward.1} parent=0 // pred_check_branch
    %17 = sbr.rel (0) target = $region13
  $region12: #{qnetwork_forward.1} parent=0 // pred_region
    _
  $region13: #{qnetwork_forward.1} parent=0 // pred_fallthru
    _
  // Predicated region
  $region14: #{qnetwork_forward.1} parent=0 // pred_check
    _
  $region15: #{qnetwork_forward.1} parent=0 // pred_check_branch
    %19 = sbr.rel (0) target = $region17
  $region16: #{qnetwork_forward.1} parent=0 // pred_region
    _
  $region17: #{qnetwork_forward.1} parent=0 // pred_fallthru
    _
  // Predicated region
  $region18: #{qnetwork_forward.1} parent=0 // pred_check
    _
  $region19: #{qnetwork_forward.1} parent=0 // pred_check_branch
    %21 = sbr.rel (0) target = $region21
  $region20: #{qnetwork_forward.1} parent=0 // pred_region
    _
  $region21: #{qnetwork_forward.1} parent=0 // pred_fallthru
    _
  // Predicated region
  $region22: #{qnetwork_forward.1} parent=0 // pred_check
    _
  $region23: #{qnetwork_forward.1} parent=0 // pred_check_branch
    %23 = sbr.rel (0) target = $region25
  $region24: #{qnetwork_forward.1} parent=0 // pred_region
    _
  $region25: #{qnetwork_forward.1} parent=0 // pred_fallthru
    _
  // Predicated region
  $region26: #{qnetwork_forward.1} parent=0 // pred_check
    _
  $region27: #{qnetwork_forward.1} parent=0 // pred_check_branch
    %25 = sbr.rel (0) target = $region29
  $region28: #{qnetwork_forward.1} parent=0 // pred_region
    _
  $region29: #{qnetwork_forward.1} parent=0 // pred_fallthru
    _
  %v27 = vld [vmem:[%s0] sm:$0xf]
  %v28 = vld [vmem:[%s0 + $0x4] sm:$0xf]
  %v29 = vld [vmem:[%s1] sm:$0x3]
  %v30 = vld [vmem:[%s2] sm:$0x1]
  %v32 = vlaneseq
  %v33 = vshrl.u32 %v32, 7
  %v34 = vsub.s32 0, %v33
  %v35 = vrot.slane %v30, %v34
  %v39 = vunpack.c.l.b16 %v27
  %v40 = vunpack.c.l.b16 %v28
  %v41 = vpack.c.b16 %v40, %v39
  %vm42 = vcmask 31744
  %v44 = vsel %vm42, %v41, 0
  %vm46 = vcmask 1041408
  %v48 = vsel %vm46, %v29, 0
  %50 = vmatprep.subr.bf16.mxu0 0
  %51 = vmatpush1.bf16.msra.mxu0 %v48
  %52 = vmatprep.subr.bf16.mxu0 0
  %53 = vmatpush1.bf16.msra.mxu0 0
  %54 = vmatprep.subr.bf16.mxu0 0
  %55 = vmatpush1.bf16.msra.mxu0 0
  %56 = vmatprep.subr.bf16.mxu0 0
  %57 = vmatpush1.bf16.msra.mxu0 0
  %58 = vmatprep.subr.bf16.mxu0 0
  %59 = vmatpush1.bf16.msra.mxu0 0
  %60 = vmatprep.subr.bf16.mxu0 0
  %61 = vmatpush1.bf16.msra.mxu0 0
  %62 = vmatprep.subr.bf16.mxu0 0
  %63 = vmatpush1.bf16.msra.mxu0 0
  %64 = vmatprep.subr.bf16.mxu0 0
  %65 = vmatpush1.bf16.msra.mxu0 0
  %66 = vmatprep.subr.bf16.mxu0 0
  %67 = vmatpush1.bf16.msra.mxu0 0
  %68 = vmatprep.subr.bf16.mxu0 0
  %69 = vmatpush1.bf16.msra.mxu0 0
  %70 = vmatprep.subr.bf16.mxu0 0
  %71 = vmatpush1.bf16.msra.mxu0 0
  %72 = vmatprep.subr.bf16.mxu0 0
  %73 = vmatpush1.bf16.msra.mxu0 0
  %74 = vmatprep.subr.bf16.mxu0 0
  %75 = vmatpush1.bf16.msra.mxu0 0
  %76 = vmatprep.subr.bf16.mxu0 0
  %77 = vmatpush1.bf16.msra.mxu0 0
  %78 = vmatprep.subr.bf16.mxu0 0
  %79 = vmatpush1.bf16.msra.mxu0 0
  %80 = vmatprep.subr.bf16.mxu0 0
  %81 = vmatpush1.bf16.msra.mxu0 0
  %82 = vmatprep.mubr.bf16.mxu0 0
  %83 = vmatmul.mubr.bf16.gmra.mrb[0].mxu0 %v44
  %v84 = vpop.f32.mrb[0].mxu0
  %v85 = vadd.f32 %v35, %v84
  %v86 = vpop.f32.mrb[0].mxu0
  %v87 = vpop.f32.mrb[0].mxu0
  %v88 = vadd.f32 %v35, %v87
  %v89 = vpop.f32.mrb[0].mxu0
  %90 = vdwg.mxu0
  %v91 = vmax.f32 %v85, 0.0
  %v92 = vmax.f32 %v88, 0.0
  %v93 = vpack.c.bf16 %v92, %v91
  %v94 = vld [vmem:[%s3] sm:$0xf]
  %v95 = vld [vmem:[%s3 + $0x4] sm:$0xf]
  %v96 = vld [vmem:[%s3 + $0x8] sm:$0xf]
  %v97 = vld [vmem:[%s3 + $0xc] sm:$0xf]
  %v98 = vld [vmem:[%s3 + $0x10] sm:$0xf]
  %v99 = vld [vmem:[%s3 + $0x14] sm:$0xf]
  %v100 = vld [vmem:[%s3 + $0x18] sm:$0xf]
  %v101 = vld [vmem:[%s3 + $0x1c] sm:$0xf]
  %v102 = vld [vmem:[%s3 + $0x20] sm:$0xf]
  %v103 = vld [vmem:[%s3 + $0x24] sm:$0xf]
  %v104 = vld [vmem:[%s3 + $0x28] sm:$0xf]
  %v105 = vld [vmem:[%s3 + $0x2c] sm:$0xf]
  %v106 = vld [vmem:[%s3 + $0x30] sm:$0xf]
  %v107 = vld [vmem:[%s3 + $0x34] sm:$0xf]
  %v108 = vld [vmem:[%s3 + $0x38] sm:$0xf]
  %v109 = vld [vmem:[%s3 + $0x3c] sm:$0xf]
  %v110 = vld [vmem:[%s4] sm:$0x1]
  %v112 = vlaneseq
  %v113 = vshrl.u32 %v112, 7
  %v114 = vsub.s32 0, %v113
  %v115 = vrot.slane %v110, %v114
  %v133 = vunpack.c.l.b16 %v94
  %v134 = vunpack.c.l.b16 %v95
  %v135 = vunpack.c.l.b16 %v96
  %v136 = vunpack.c.l.b16 %v97
  %v137 = vunpack.c.l.b16 %v98
  %v138 = vunpack.c.l.b16 %v99
  %v139 = vunpack.c.l.b16 %v100
  %v140 = vunpack.c.l.b16 %v101
  %v141 = vunpack.c.l.b16 %v102
  %v142 = vunpack.c.l.b16 %v103
  %v143 = vunpack.c.l.b16 %v104
  %v144 = vunpack.c.l.b16 %v105
  %v145 = vunpack.c.l.b16 %v106
  %v146 = vunpack.c.l.b16 %v107
  %v147 = vunpack.c.l.b16 %v108
  %v148 = vunpack.c.l.b16 %v109
  %v149 = vpack.c.b16 %v134, %v133
  %v150 = vpack.c.b16 %v136, %v135
  %v151 = vpack.c.b16 %v138, %v137
  %v152 = vpack.c.b16 %v140, %v139
  %v153 = vpack.c.b16 %v142, %v141
  %v154 = vpack.c.b16 %v144, %v143
  %v155 = vpack.c.b16 %v146, %v145
  %v156 = vpack.c.b16 %v148, %v147
  %165 = vmatprep.subr.bf16.mxu0 0
  %166 = vmatpush1.bf16.msra.mxu0 %v149
  %167 = vmatprep.subr.bf16.mxu0 0
  %168 = vmatpush1.bf16.msra.mxu0 %v150
  %169 = vmatprep.subr.bf16.mxu0 0
  %170 = vmatpush1.bf16.msra.mxu0 %v151
  %171 = vmatprep.subr.bf16.mxu0 0
  %172 = vmatpush1.bf16.msra.mxu0 %v152
  %173 = vmatprep.subr.bf16.mxu0 0
  %174 = vmatpush1.bf16.msra.mxu0 %v153
  %175 = vmatprep.subr.bf16.mxu0 0
  %176 = vmatpush1.bf16.msra.mxu0 %v154
  %177 = vmatprep.subr.bf16.mxu0 0
  %178 = vmatpush1.bf16.msra.mxu0 %v155
  %179 = vmatprep.subr.bf16.mxu0 0
  %180 = vmatpush1.bf16.msra.mxu0 %v156
  %181 = vmatprep.subr.bf16.mxu0 0
  %182 = vmatpush1.bf16.msra.mxu0 0
  %183 = vmatprep.subr.bf16.mxu0 0
  %184 = vmatpush1.bf16.msra.mxu0 0
  %185 = vmatprep.subr.bf16.mxu0 0
  %186 = vmatpush1.bf16.msra.mxu0 0
  %187 = vmatprep.subr.bf16.mxu0 0
  %188 = vmatpush1.bf16.msra.mxu0 0
  %189 = vmatprep.subr.bf16.mxu0 0
  %190 = vmatpush1.bf16.msra.mxu0 0
  %191 = vmatprep.subr.bf16.mxu0 0
  %192 = vmatpush1.bf16.msra.mxu0 0
  %193 = vmatprep.subr.bf16.mxu0 0
  %194 = vmatpush1.bf16.msra.mxu0 0
  %195 = vmatprep.subr.bf16.mxu0 0
  %196 = vmatpush1.bf16.msra.mxu0 0
  %197 = vmatprep.mubr.bf16.mxu0 0
  %198 = vmatmul.mubr.bf16.gmra.mrb[0].mxu0 %v93
  %v199 = vpop.f32.mrb[0].mxu0
  %v200 = vadd.f32 %v115, %v199
  %v201 = vpop.f32.mrb[0].mxu0
  %v202 = vpop.f32.mrb[0].mxu0
  %v203 = vadd.f32 %v115, %v202
  %v204 = vpop.f32.mrb[0].mxu0
  %205 = vdwg.mxu0
  %v206 = vmax.f32 %v200, 0.0
  %v207 = vmax.f32 %v203, 0.0
  %v208 = vpack.c.bf16 %v207, %v206
  %v209 = vld [vmem:[%s5] sm:$0xf]
  %v210 = vld [vmem:[%s5 + $0x4] sm:$0xf]
  %v211 = vld [vmem:[%s5 + $0x8] sm:$0xf]
  %v212 = vld [vmem:[%s5 + $0xc] sm:$0xf]
  %v213 = vld [vmem:[%s5 + $0x10] sm:$0xf]
  %v214 = vld [vmem:[%s5 + $0x14] sm:$0xf]
  %v215 = vld [vmem:[%s5 + $0x18] sm:$0xf]
  %v216 = vld [vmem:[%s5 + $0x1c] sm:$0xf]
  %v217 = vld [vmem:[%s5 + $0x20] sm:$0xf]
  %v218 = vld [vmem:[%s5 + $0x24] sm:$0xf]
  %v219 = vld [vmem:[%s5 + $0x28] sm:$0xf]
  %v220 = vld [vmem:[%s5 + $0x2c] sm:$0xf]
  %v221 = vld [vmem:[%s5 + $0x30] sm:$0xf]
  %v222 = vld [vmem:[%s5 + $0x34] sm:$0xf]
  %v223 = vld [vmem:[%s5 + $0x38] sm:$0xf]
  %v224 = vld [vmem:[%s5 + $0x3c] sm:$0xf]
  %v225 = vld [vmem:[%s6] sm:$0x1]
  %v227 = vlaneseq
  %v228 = vshrl.u32 %v227, 7
  %v229 = vsub.s32 0, %v228
  %v230 = vrot.slane %v225, %v229
  %v248 = vunpack.c.l.b16 %v209
  %v249 = vunpack.c.l.b16 %v210
  %v250 = vunpack.c.l.b16 %v211
  %v251 = vunpack.c.l.b16 %v212
  %v252 = vunpack.c.l.b16 %v213
  %v253 = vunpack.c.l.b16 %v214
  %v254 = vunpack.c.l.b16 %v215
  %v255 = vunpack.c.l.b16 %v216
  %v256 = vunpack.c.l.b16 %v217
  %v257 = vunpack.c.l.b16 %v218
  %v258 = vunpack.c.l.b16 %v219
  %v259 = vunpack.c.l.b16 %v220
  %v260 = vunpack.c.l.b16 %v221
  %v261 = vunpack.c.l.b16 %v222
  %v262 = vunpack.c.l.b16 %v223
  %v263 = vunpack.c.l.b16 %v224
  %v264 = vpack.c.b16 %v249, %v248
  %v265 = vpack.c.b16 %v251, %v250
  %v266 = vpack.c.b16 %v253, %v252
  %v267 = vpack.c.b16 %v255, %v254
  %v268 = vpack.c.b16 %v257, %v256
  %v269 = vpack.c.b16 %v259, %v258
  %v270 = vpack.c.b16 %v261, %v260
  %v271 = vpack.c.b16 %v263, %v262
  %280 = vmatprep.subr.bf16.mxu0 0
  %281 = vmatpush1.bf16.msra.mxu0 %v264
  %282 = vmatprep.subr.bf16.mxu0 0
  %283 = vmatpush1.bf16.msra.mxu0 %v265
  %284 = vmatprep.subr.bf16.mxu0 0
  %285 = vmatpush1.bf16.msra.mxu0 %v266
  %286 = vmatprep.subr.bf16.mxu0 0
  %287 = vmatpush1.bf16.msra.mxu0 %v267
  %288 = vmatprep.subr.bf16.mxu0 0
  %289 = vmatpush1.bf16.msra.mxu0 %v268
  %290 = vmatprep.subr.bf16.mxu0 0
  %291 = vmatpush1.bf16.msra.mxu0 %v269
  %292 = vmatprep.subr.bf16.mxu0 0
  %293 = vmatpush1.bf16.msra.mxu0 %v270
  %294 = vmatprep.subr.bf16.mxu0 0
  %295 = vmatpush1.bf16.msra.mxu0 %v271
  %296 = vmatprep.subr.bf16.mxu0 0
  %297 = vmatpush1.bf16.msra.mxu0 0
  %298 = vmatprep.subr.bf16.mxu0 0
  %299 = vmatpush1.bf16.msra.mxu0 0
  %300 = vmatprep.subr.bf16.mxu0 0
  %301 = vmatpush1.bf16.msra.mxu0 0
  %302 = vmatprep.subr.bf16.mxu0 0
  %303 = vmatpush1.bf16.msra.mxu0 0
  %304 = vmatprep.subr.bf16.mxu0 0
  %305 = vmatpush1.bf16.msra.mxu0 0
  %306 = vmatprep.subr.bf16.mxu0 0
  %307 = vmatpush1.bf16.msra.mxu0 0
  %308 = vmatprep.subr.bf16.mxu0 0
  %309 = vmatpush1.bf16.msra.mxu0 0
  %310 = vmatprep.subr.bf16.mxu0 0
  %311 = vmatpush1.bf16.msra.mxu0 0
  %312 = vmatprep.mubr.bf16.mxu0 0
  %313 = vmatmul.mubr.bf16.gmra.mrb[0].mxu0 %v208
  %v314 = vpop.f32.mrb[0].mxu0
  %v315 = vadd.f32 %v230, %v314
  %v316 = vpop.f32.mrb[0].mxu0
  %v317 = vpop.f32.mrb[0].mxu0
  %v318 = vadd.f32 %v230, %v317
  %v319 = vpop.f32.mrb[0].mxu0
  %320 = vdwg.mxu0
  %vm321 = vcmask 15360
  %322 = vst.msk [vmem:[%s7] sm:$0xff] %vm321, %v315
  %323 = vst.msk [vmem:[%s7 + $0x8] sm:$0xff] %vm321, %v318
  // Predicated region
  $region30: #{qnetwork_forward.1} parent=0 // pred_check
    _
  $region31: #{qnetwork_forward.1} parent=0 // pred_check_branch
    %325 = sbr.rel (0) target = $region33
  $region32: #{qnetwork_forward.1} parent=0 // pred_region
    _
  $region33: #{qnetwork_forward.1} parent=0 // pred_fallthru
    _
  // Predicated region
  $region34: #{qnetwork_forward.1} parent=0 // pred_check
    _
  $region35: #{qnetwork_forward.1} parent=0 // pred_check_branch
    %327 = sbr.rel (0) target = $region37
  $region36: #{qnetwork_forward.1} parent=0 // pred_region
    _
  $region37: #{qnetwork_forward.1} parent=0 // pred_fallthru
    _

</llo_original>
